<compile_context>
chip_gen: v5e
topology: v5e:2x2
jax: 0.10.0
libtpu: 0.0.40
codegen_flags: <defaults>
</compile_context>

<pallas_src>
import jax
import jax.numpy as jnp
from jax.experimental import pallas as pl
from jax.experimental.pallas import tpu as pltpu

CLAMP_EPS = 1e-4     # torch.clamp(heats, 0.0001, 1 - 0.0001)
RESIDUAL = 1e-4      # residual = torch.tensor(0.0001)

_SENTINEL_GT = 2.0   # gt==1 (pos) False and gt<1 (neg) False -> zero contribution
_SENTINEL_PRED = 0.5


def _round_up(x, m):
    return ((x + m - 1) // m) * m


# ----------------------------- focal loss kernel -----------------------------
def _focal_kernel(pred_ref, gt_ref, out_ref, sum_acc, cnt_acc):
    # pred_ref / gt_ref: (G, LT) tiles; out_ref: (1,1) SMEM
    # sum_acc / cnt_acc: (G, LT) f32 VMEM element-wise accumulators
    t = pl.program_id(0)

    @pl.when(t == 0)
    def _init():
        sum_acc[...] = jnp.zeros_like(sum_acc)
        cnt_acc[...] = jnp.zeros_like(cnt_acc)

    p = jnp.clip(pred_ref[...].astype(jnp.float32), CLAMP_EPS, 1.0 - CLAMP_EPS)
    g = gt_ref[...].astype(jnp.float32)

    pos = g == 1.0
    neg = g < 1.0

    one_m_p = 1.0 - p
    one_m_g = 1.0 - g
    # Single transcendental per element:
    #   pos cells: (1-p)^2        * log(p)
    #   neg cells: (1-g)^4 * p^2  * log(1-p)
    log_term = jnp.log(jnp.where(pos, p, one_m_p))
    neg_w = (one_m_g * one_m_g) * (one_m_g * one_m_g) * (p * p)
    coeff = jnp.where(pos, one_m_p * one_m_p, jnp.where(neg, neg_w, 0.0))

    sum_acc[...] += coeff * log_term
    cnt_acc[...] += pos.astype(jnp.float32)

    @pl.when(t == pl.num_programs(0) - 1)
    def _finalize():
        tot = jnp.sum(sum_acc[...], axis=1, keepdims=True)    # (G, 1)
        npos = jnp.sum(cnt_acc[...], axis=1, keepdims=True)   # (G, 1)
        # per (level, batch) group: -(pos+neg)/num_pos, or -neg if num_pos==0
        per_group = jnp.where(npos > 0.0, -tot / jnp.maximum(npos, 1.0), -tot)
        out_ref[0, 0] = jnp.sum(per_group)


def focal_loss_fused(heat_preds, heat_gts, *, lane_tile=2048):
    """Fused focal loss over all FPN levels. Groups = (level, batch)."""
    b = heat_preds[0].shape[0]
    n_levels = len(heat_preds)

    flat_p, flat_g, lens = [], [], []
    for hp, hg in zip(heat_preds, heat_gts):
        flat_p.append(hp.reshape(b, -1))
        flat_g.append(hg.reshape(b, -1))
        lens.append(flat_p[-1].shape[1])

    s_max = max(_round_up(n, 128) for n in lens)
    lane_tile = min(lane_tile, s_max)
    s_max = _round_up(s_max, lane_tile)

    rows_p, rows_g = [], []
    for fp, fg, n in zip(flat_p, flat_g, lens):
        pad = s_max - n
        rows_p.append(jnp.pad(fp, ((0, 0), (0, pad)),
                              constant_values=_SENTINEL_PRED))
        rows_g.append(jnp.pad(fg, ((0, 0), (0, pad)),
                              constant_values=_SENTINEL_GT))
    pred_p = jnp.concatenate(rows_p, axis=0)   # (L*B, S)
    gt_p = jnp.concatenate(rows_g, axis=0)

    g_rows = n_levels * b
    g_pad = _round_up(g_rows, 8)               # sublane-dense row count
    if g_pad > g_rows:
        pred_p = jnp.pad(pred_p, ((0, g_pad - g_rows), (0, 0)),
                         constant_values=_SENTINEL_PRED)
        gt_p = jnp.pad(gt_p, ((0, g_pad - g_rows), (0, 0)),
                       constant_values=_SENTINEL_GT)

    num_tiles = s_max // lane_tile

    out = pl.pallas_call(
        _focal_kernel,
        out_shape=jax.ShapeDtypeStruct((1, 1), jnp.float32),
        grid_spec=pltpu.PrefetchScalarGridSpec(
            num_scalar_prefetch=0,
            grid=(num_tiles,),
            in_specs=[
                pl.BlockSpec((g_pad, lane_tile), lambda t: (0, t)),
                pl.BlockSpec((g_pad, lane_tile), lambda t: (0, t)),
            ],
            out_specs=pl.BlockSpec(memory_space=pltpu.MemorySpace.SMEM),
            scratch_shapes=[
                pltpu.VMEM((g_pad, lane_tile), jnp.float32),
                pltpu.VMEM((g_pad, lane_tile), jnp.float32),
            ]),
        compiler_params=pltpu.CompilerParams(
            dimension_semantics=("arbitrary",),
            vmem_limit_bytes=32 * 1024 * 1024),
    )(pred_p, gt_p)
    return out[0, 0]


# ------------------------- size regression loss kernel -----------------------
def _regre_kernel(pred_ref, gt_ref, pos_ref, out_ref,
                  sl1_acc, cnt_acc, total_acc):
    # pred_ref / gt_ref: (B, 4, LT); pos_ref: (B, 1, LT); out_ref: (1,1) SMEM
    lvl = pl.program_id(0)
    t = pl.program_id(1)

    @pl.when((lvl == 0) & (t == 0))
    def _init_total():
        total_acc[0] = 0.0

    @pl.when(t == 0)
    def _init_acc():
        sl1_acc[...] = jnp.zeros_like(sl1_acc)
        cnt_acc[...] = jnp.zeros_like(cnt_acc)

    pred = pred_ref[...].astype(jnp.float32)
    gt = gt_ref[...].astype(jnp.float32)
    pos = (pos_ref[...].astype(jnp.float32) > 0.0).astype(jnp.float32)

    diff = pred - gt
    adiff = jnp.abs(diff)
    # smooth_l1_loss, sum reduction (size_average=False), beta = 1.0
    sl1 = jnp.where(adiff < 1.0, 0.5 * diff * diff, adiff - 0.5)
    sl1_acc[...] += sl1 * pos          # (B,1,LT) broadcast over 4 channels
    cnt_acc[...] += pos

    @pl.when(t == pl.num_programs(1) - 1)
    def _finalize_level():
        x_loss = jnp.sum(sl1_acc[...])
        obj_num = jnp.sum(cnt_acc[...])       # number of positive cells
        lvl_loss = jnp.where(obj_num > 0.0, x_loss / (obj_num + RESIDUAL), 0.0)
        total_acc[0] += lvl_loss

    @pl.when((lvl == pl.num_programs(0) - 1) & (t == pl.num_programs(1) - 1))
    def _write_out():
        out_ref[0, 0] = total_acc[0]


def regre_loss_fused(size_preds, size_gts, pos_gts, *, lane_tile=2048):
    """Fused smooth-L1 size loss over all FPN levels (per-level normalization)."""
    b, c = size_preds[0].shape[0], size_preds[0].shape[1]   # c == 4
    n_levels = len(size_preds)

    hw = [sp.shape[2] * sp.shape[3] for sp in size_preds]
    s_max = max(_round_up(n, 128) for n in hw)
    lane_tile = min(lane_tile, s_max)
    s_max = _round_up(s_max, lane_tile)

    preds, gts, poss = [], [], []
    for sp, sg, pg, n in zip(size_preds, size_gts, pos_gts, hw):
        pad = s_max - n
        preds.append(jnp.pad(sp.reshape(b, c, n), ((0, 0), (0, 0), (0, pad))))
        gts.append(jnp.pad(sg.reshape(b, c, n), ((0, 0), (0, 0), (0, pad))))
        poss.append(jnp.pad(pg.reshape(b, 1, n), ((0, 0), (0, 0), (0, pad))))
    pred_p = jnp.stack(preds, axis=0)   # (L, B, 4, S)
    gt_p = jnp.stack(gts, axis=0)       # (L, B, 4, S)
    pos_p = jnp.stack(poss, axis=0)     # (L, B, 1, S)

    num_tiles = s_max // lane_tile

    out = pl.pallas_call(
        _regre_kernel,
        out_shape=jax.ShapeDtypeStruct((1, 1), jnp.float32),
        grid_spec=pltpu.PrefetchScalarGridSpec(
            num_scalar_prefetch=0,
            grid=(n_levels, num_tiles),
            in_specs=[
                pl.BlockSpec((None, b, c, lane_tile),
                             lambda l, t: (l, 0, 0, t)),
                pl.BlockSpec((None, b, c, lane_tile),
                             lambda l, t: (l, 0, 0, t)),
                pl.BlockSpec((None, b, 1, lane_tile),
                             lambda l, t: (l, 0, 0, t)),
            ],
            out_specs=pl.BlockSpec(memory_space=pltpu.MemorySpace.SMEM),
            scratch_shapes=[
                pltpu.VMEM((b, c, lane_tile), jnp.float32),
                pltpu.VMEM((b, 1, lane_tile), jnp.float32),
                pltpu.SMEM((1,), jnp.float32),
            ]),
        compiler_params=pltpu.CompilerParams(
            dimension_semantics=("arbitrary", "arbitrary"),
            vmem_limit_bytes=32 * 1024 * 1024),
    )(pred_p, gt_p, pos_p)
    return out[0, 0]


# --------------------------------- Loss.forward ------------------------------
def loss_forward(pred, gt, center_weight=1.0, size_weight=0.1, off_weight=1.0,
                 focal_lane_tile=2048, size_lane_tile=2048):
    # pred = [heats_P2, size_P2, heats_P3, size_P3, heats_P4, size_P4]
    # gt   = [heat_P2, size_P2, pos_P2, heat_P3, size_P3, pos_P3,
    #         heat_P4, size_P4, pos_P4]
    heats = [pred[0], pred[2], pred[4]]
    sizes = [pred[1], pred[3], pred[5]]
    gt_heats = [gt[0], gt[3], gt[6]]
    gt_sizes = [gt[1], gt[4], gt[7]]
    gt_pos = [gt[2], gt[5], gt[8]]
    batch = heats[0].shape[0]

    focal = focal_loss_fused(heats, gt_heats,
                             lane_tile=focal_lane_tile) * center_weight
    size = regre_loss_fused(sizes, gt_sizes, gt_pos,
                            lane_tile=size_lane_tile) * size_weight

    total = (focal + size) / batch
    return jnp.reshape(total, (1,)), focal, size


# -------------------------- pure-JAX reference (check) -----------------------
def _ref_focal(pred, gt):
    b = pred.shape[0]
    pred = jnp.clip(pred, CLAMP_EPS, 1.0 - CLAMP_EPS)
    loss = 0.0
    for i in range(b):
        p = pred[i].reshape(-1)
        g = gt[i].reshape(-1)
        pos = g == 1.0
        neg = g < 1.0
        pos_loss = jnp.sum(jnp.where(pos, (1.0 - p) ** 2 * jnp.log(p), 0.0))
        neg_loss = jnp.sum(jnp.where(
            neg, (1.0 - g) ** 4 * p ** 2 * jnp.log(1.0 - p), 0.0))
        num_pos = jnp.sum(pos.astype(jnp.float32))
        loss = loss + jnp.where(
            num_pos == 0.0, -neg_loss,
            -(pos_loss + neg_loss) / jnp.maximum(num_pos, 1.0))
    return loss


def _ref_regre(pred, gt, pos):
    m = (pos > 0.0).astype(jnp.float32)
    diff = pred - gt
    ad = jnp.abs(diff)
    sl1 = jnp.where(ad < 1.0, 0.5 * diff * diff, ad - 0.5)
    x_loss = jnp.sum(sl1 * m)
    obj = jnp.sum(m)
    return jnp.where(obj == 0.0, 0.0, x_loss / (obj + RESIDUAL))


if __name__ == "__main__":
    key = jax.random.PRNGKey(0)
    B, C = 2, 4                                 # batch, heatmap classes
    level_shapes = [(16, 16), (8, 8), (4, 4)]   # FPN P2 / P3 / P4

    pred, gt = [], []
    for (H, W) in level_shapes:
        key, k1, k2, k3, k4, k5 = jax.random.split(key, 6)
        heat_pred = jax.nn.sigmoid(jax.random.normal(k1, (B, C, H, W),
                                                     jnp.float32))
        size_pred = jax.random.normal(k2, (B, 4, H, W), jnp.float32)
        pred += [heat_pred, size_pred]

        gt_heat = jax.random.uniform(k3, (B, C, H, W), jnp.float32, 0.0, 0.9)
        peak = jax.random.uniform(k4, (B, C, H, W)) > 0.95
        gt_heat = jnp.where(peak, 1.0, gt_heat)          # exact 1.0 at peaks
        gt_size = jax.random.uniform(k5, (B, 4, H, W), jnp.float32, 0.0, 10.0)
        center_pos = jnp.any(peak, axis=1, keepdims=True).astype(jnp.float32)
        gt += [gt_heat, gt_size, center_pos]

    # small lane tiles here so the multi-tile accumulate/finalize path is
    # exercised even at toy shapes; defaults (2048) are production-sized.
    out, focal, size = loss_forward(pred, gt,
                                    focal_lane_tile=512, size_lane_tile=128)
    out = jax.block_until_ready(out)

    # correctness check against a pure-JAX reference of the PyTorch module
    heats = [pred[0], pred[2], pred[4]]
    sizes_p = [pred[1], pred[3], pred[5]]
    gt_heats = [gt[0], gt[3], gt[6]]
    gt_sizes = [gt[1], gt[4], gt[7]]
    gt_pos = [gt[2], gt[5], gt[8]]
    ref_focal = sum(_ref_focal(h, g) for h, g in zip(heats, gt_heats)) * 1.0
    ref_size = sum(_ref_regre(s, g, p)
                   for s, g, p in zip(sizes_p, gt_sizes, gt_pos)) * 0.1
    ref_total = (ref_focal + ref_size) / B

    def _close(a, b_):
        return abs(float(a) - float(b_)) <= 1e-3 + 1e-4 * abs(float(b_))

    assert out.shape == (1,)
    assert _close(focal, ref_focal), (float(focal), float(ref_focal))
    assert _close(size, ref_size), (float(size), float(ref_size))
    assert _close(out[0], ref_total), (float(out[0]), float(ref_total))

    print('focal loss: ' + str(float(focal)))
    print('size loss: ' + str(float(size)))
    print("KERNEL_OK")
</pallas_src>

<mosaic_0001>
module attributes {stable_mosaic.version = 11 : i64} {
  func.func @_focal_kernel(%arg0: i32, %arg1: memref<8x512xf32, #tpu.memory_space<vmem>>, %arg2: memref<8x512xf32, #tpu.memory_space<vmem>>, %arg3: memref<1x1xf32, #tpu.memory_space<smem>>, %arg4: memref<8x512xf32, #tpu.memory_space<vmem>>, %arg5: memref<8x512xf32, #tpu.memory_space<vmem>>) attributes {dimension_semantics = [#tpu.dimension_semantics<arbitrary>], iteration_bounds = array<i64: 2>, scalar_prefetch = 0 : i64, scratch_operands = 2 : i64, tpu.core_type = #tpu.core_type<tc>, window_params = [{transform_indices = @transform_0, window_bounds = array<i64: 8, 512>}, {transform_indices = @transform_1, window_bounds = array<i64: 8, 512>}, {transform_indices = @transform_2, window_bounds = array<i64: 1, 1>}]} {
    %c0_i32 = arith.constant 0 : i32
    %0 = arith.cmpi eq, %arg0, %c0_i32 : i32
    %1 = arith.extui %0 : i1 to i32
    %c0_i32_0 = arith.constant 0 : i32
    %2 = arith.cmpi ne, %1, %c0_i32_0 : i32
    scf.if %2 {
      %cst_19 = arith.constant 0.000000e+00 : f32
      %40 = vector.broadcast %cst_19 : f32 to vector<8x512xf32>
      %c0_20 = arith.constant 0 : index
      %c0_21 = arith.constant 0 : index
      %41 = vector.load %arg4[%c0_20, %c0_21] : memref<8x512xf32, #tpu.memory_space<vmem>>, vector<8x512xf32>
      tpu.vector_store %arg4[%c0_20, %c0_21], %40 {strides = array<i32>} : memref<8x512xf32, #tpu.memory_space<vmem>>, vector<8x512xf32>,
      %cst_22 = arith.constant 0.000000e+00 : f32
      %42 = vector.broadcast %cst_22 : f32 to vector<8x512xf32>
      %c0_23 = arith.constant 0 : index
      %c0_24 = arith.constant 0 : index
      %43 = vector.load %arg5[%c0_23, %c0_24] : memref<8x512xf32, #tpu.memory_space<vmem>>, vector<8x512xf32>
      tpu.vector_store %arg5[%c0_23, %c0_24], %42 {strides = array<i32>} : memref<8x512xf32, #tpu.memory_space<vmem>>, vector<8x512xf32>,
    } else {
    }
    %c0 = arith.constant 0 : index
    %c0_1 = arith.constant 0 : index
    %3 = vector.load %arg1[%c0, %c0_1] : memref<8x512xf32, #tpu.memory_space<vmem>>, vector<8x512xf32>
    %cst = arith.constant 9.99999974E-5 : f32
    %cst_2 = arith.constant 0.999899983 : f32
    %4 = vector.broadcast %cst : f32 to vector<8x512xf32>
    %5 = arith.maximumf %4, %3 : vector<8x512xf32>
    %6 = vector.broadcast %cst_2 : f32 to vector<8x512xf32>
    %7 = arith.minimumf %6, %5 : vector<8x512xf32>
    %c0_3 = arith.constant 0 : index
    %c0_4 = arith.constant 0 : index
    %8 = vector.load %arg2[%c0_3, %c0_4] : memref<8x512xf32, #tpu.memory_space<vmem>>, vector<8x512xf32>
    %cst_5 = arith.constant 1.000000e+00 : f32
    %9 = vector.broadcast %cst_5 : f32 to vector<8x512xf32>
    %10 = arith.cmpf oeq, %8, %9 : vector<8x512xf32>
    %cst_6 = arith.constant 1.000000e+00 : f32
    %11 = vector.broadcast %cst_6 : f32 to vector<8x512xf32>
    %12 = arith.cmpf olt, %8, %11 : vector<8x512xf32>
    %cst_7 = arith.constant 1.000000e+00 : f32
    %13 = vector.broadcast %cst_7 : f32 to vector<8x512xf32>
    %14 = arith.subf %13, %7 : vector<8x512xf32>
    %cst_8 = arith.constant 1.000000e+00 : f32
    %15 = vector.broadcast %cst_8 : f32 to vector<8x512xf32>
    %16 = arith.subf %15, %8 : vector<8x512xf32>
    %17 = arith.select %10, %7, %14 : vector<8x512xi1>, vector<8x512xf32>
    %18 = math.log %17 : vector<8x512xf32>
    %19 = arith.mulf %16, %16 : vector<8x512xf32>
    %20 = arith.mulf %16, %16 : vector<8x512xf32>
    %21 = arith.mulf %19, %20 : vector<8x512xf32>
    %22 = arith.mulf %7, %7 : vector<8x512xf32>
    %23 = arith.mulf %21, %22 : vector<8x512xf32>
    %24 = arith.mulf %14, %14 : vector<8x512xf32>
    %cst_9 = arith.constant 0.000000e+00 : f32
    %25 = vector.broadcast %cst_9 : f32 to vector<8x512xf32>
    %26 = arith.select %12, %23, %25 : vector<8x512xi1>, vector<8x512xf32>
    %27 = arith.select %10, %24, %26 : vector<8x512xi1>, vector<8x512xf32>
    %c0_10 = arith.constant 0 : index
    %c0_11 = arith.constant 0 : index
    %28 = vector.load %arg4[%c0_10, %c0_11] : memref<8x512xf32, #tpu.memory_space<vmem>>, vector<8x512xf32>
    %29 = arith.mulf %27, %18 : vector<8x512xf32>
    %30 = arith.addf %28, %29 : vector<8x512xf32>
    %c0_12 = arith.constant 0 : index
    %c0_13 = arith.constant 0 : index
    %31 = vector.load %arg4[%c0_12, %c0_13] : memref<8x512xf32, #tpu.memory_space<vmem>>, vector<8x512xf32>
    tpu.vector_store %arg4[%c0_12, %c0_13], %30 {strides = array<i32>} : memref<8x512xf32, #tpu.memory_space<vmem>>, vector<8x512xf32>,
    %c0_14 = arith.constant 0 : index
    %c0_15 = arith.constant 0 : index
    %32 = vector.load %arg5[%c0_14, %c0_15] : memref<8x512xf32, #tpu.memory_space<vmem>>, vector<8x512xf32>
    %33 = arith.extui %10 : vector<8x512xi1> to vector<8x512xi32>
    %34 = arith.sitofp %33 : vector<8x512xi32> to vector<8x512xf32>
    %35 = arith.addf %32, %34 : vector<8x512xf32>
    %c0_16 = arith.constant 0 : index
    %c0_17 = arith.constant 0 : index
    %36 = vector.load %arg5[%c0_16, %c0_17] : memref<8x512xf32, #tpu.memory_space<vmem>>, vector<8x512xf32>
    tpu.vector_store %arg5[%c0_16, %c0_17], %35 {strides = array<i32>} : memref<8x512xf32, #tpu.memory_space<vmem>>, vector<8x512xf32>,
    %c1_i32 = arith.constant 1 : i32
    %37 = arith.cmpi eq, %arg0, %c1_i32 : i32
    %38 = arith.extui %37 : i1 to i32
    %c0_i32_18 = arith.constant 0 : i32
    %39 = arith.cmpi ne, %38, %c0_i32_18 : i32
    scf.if %39 {
      %c0_19 = arith.constant 0 : index
      %c0_20 = arith.constant 0 : index
      %40 = vector.load %arg4[%c0_19, %c0_20] : memref<8x512xf32, #tpu.memory_space<vmem>>, vector<8x512xf32>
      %cst_21 = arith.constant dense<0.000000e+00> : vector<8xf32>
      %41 = vector.multi_reduction <add>, %40, %cst_21 [1] : vector<8x512xf32> to vector<8xf32>
      %42 = vector.shape_cast %41 : vector<8xf32> to vector<8x1xf32>
      %c0_22 = arith.constant 0 : index
      %c0_23 = arith.constant 0 : index
      %43 = vector.load %arg5[%c0_22, %c0_23] : memref<8x512xf32, #tpu.memory_space<vmem>>, vector<8x512xf32>
      %cst_24 = arith.constant dense<0.000000e+00> : vector<8xf32>
      %44 = vector.multi_reduction <add>, %43, %cst_24 [1] : vector<8x512xf32> to vector<8xf32>
      %45 = vector.shape_cast %44 : vector<8xf32> to vector<8x1xf32>
      %cst_25 = arith.constant 0.000000e+00 : f32
      %46 = vector.broadcast %cst_25 : f32 to vector<8x1xf32>
      %47 = arith.cmpf ogt, %45, %46 : vector<8x1xf32>
      %cst_26 = arith.constant 0.000000e+00 : f32
      %48 = vector.broadcast %cst_26 : f32 to vector<8x1xf32>
      %49 = arith.subf %48, %42 : vector<8x1xf32>
      %cst_27 = arith.constant 1.000000e+00 : f32
      %50 = vector.broadcast %cst_27 : f32 to vector<8x1xf32>
      %51 = arith.maximumf %45, %50 : vector<8x1xf32>
      %52 = arith.divf %49, %51 : vector<8x1xf32>
      %cst_28 = arith.constant 0.000000e+00 : f32
      %53 = vector.broadcast %cst_28 : f32 to vector<8x1xf32>
      %54 = arith.subf %53, %42 : vector<8x1xf32>
      %55 = arith.select %47, %52, %54 : vector<8x1xi1>, vector<8x1xf32>
      %56 = vector.shape_cast %55 : vector<8x1xf32> to vector<1x8x1xf32>
      %cst_29 = arith.constant dense<0.000000e+00> : vector<1xf32>
      %57 = vector.multi_reduction <add>, %56, %cst_29 [1, 2] : vector<1x8x1xf32> to vector<1xf32>
      %58 = vector.shape_cast %57 : vector<1xf32> to vector<1x1x1xf32>
      %59 = vector.extract %58[0, 0, 0] : f32 from vector<1x1x1xf32>
      %c0_30 = arith.constant 0 : index
      %c0_31 = arith.constant 0 : index
      %60 = memref.load %arg3[%c0_30, %c0_31] : memref<1x1xf32, #tpu.memory_space<smem>>
      memref.store %59, %arg3[%c0_30, %c0_31] : memref<1x1xf32, #tpu.memory_space<smem>>
    } else {
    }
    return
  }
  func.func @transform_0(%arg0: i32) -> (i32, i32) {
    %c0_i32 = arith.constant 0 : i32
    %c0_i32_0 = arith.constant 0 : i32
    return %c0_i32, %arg0 : i32, i32
  }
  func.func @transform_1(%arg0: i32) -> (i32, i32) {
    %c0_i32 = arith.constant 0 : i32
    %c0_i32_0 = arith.constant 0 : i32
    return %c0_i32, %arg0 : i32, i32
  }
  func.func @transform_2(%arg0: i32) -> (i32, i32) {
    %c0_i32 = arith.constant 0 : i32
    %c0_i32_0 = arith.constant 0 : i32
    %c0_i32_1 = arith.constant 0 : i32
    return %c0_i32, %c0_i32_0 : i32, i32
  }
}

</mosaic_0001>

<llo_original>
// kernel: tpu_custom_call.1
$region0: #{tpu_custom_call.1}
  #allocation0 [shape = 'u32[]', space=smem, size = 0x4, offset = 0x4, fixed_abs, tag = 'smem constant byte address 0x4 - core index']
  #allocation1 [shape = 'u32[72,128]{1,0:T(1,128)}', space=vmem, size = 0x9000, scoped, tag = 'internal scratch']
  #allocation2 [shape = 'f32[8,512]{1,0:T(8,128)}', space=vmem, size = 0x4000, scoped, tag = 'scratch operand']
  #allocation3 [shape = 'f32[8,512]{1,0:T(8,128)}', space=vmem, size = 0x4000, scoped, tag = 'scratch operand']
  %s0 = inlined_call_operand.hbm [shape: f32[8,1024], index: 0, kind: input, shape index: {}]
  %s1 = inlined_call_operand.hbm [shape: f32[8,1024], index: 1, kind: input, shape index: {}]
  %s2 = inlined_call_operand.hbm [shape: f32[1,1], index: 2, kind: output, shape index: {}]
  %s3 = sld [smem:[#allocation0]]
  $region57: #{tpu_custom_call.1} parent=0
    _
  %s5 = ssub.s32 1, %s3
  %s6 = scalar_select 0, %s5, %s3
  $region1: #{tpu_custom_call.1} parent=0
    #allocation4 [shape = 'u8[32768]{0}', space=vmem, size = 0x8000, scoped, tag = 'input window, operand 0']
    #allocation5 [shape = 's32[2]{0}', space=sflag, size = 0x8, scoped, tag = 'scoped memory for tpu_custom_call.1']
    #allocation6 [shape = 's32[2]{0}', space=sflag, size = 0x8, scoped, tag = 'scoped memory for tpu_custom_call.1']
    #allocation7 [shape = 'u8[32768]{0}', space=vmem, size = 0x8000, scoped, tag = 'input window, operand 1']
    #allocation8 [shape = 's32[2]{0}', space=sflag, size = 0x8, scoped, tag = 'scoped memory for tpu_custom_call.1']
    #allocation9 [shape = 'u8[512]{0}', space=smem, size = 0x200, scoped, tag = 'output window, operand 0, single buffered']
    %7 = vsyncpa [#allocation5], 0
    %s8 = scalar_lea.sflag [#allocation5], 1
    %9 = vsyncpa %s8, 0
    %10 = vsyncpa [#allocation8], 0
    %s11 = scalar_lea.sflag [#allocation8], 1
    %12 = vsyncpa %s11, 0
    %13 = vsyncpa [#allocation6], 0
    loop: start=0, step=1, limit=4
    $region2: #{tpu_custom_call.1} parent=1 // loop_pre_header
      _
    $region3: #{tpu_custom_call.1} parent=1 // loop_header
      %s15 = sphi 0, %s19
      %p16 = scmp.ge.s32.totalorder %s15, 4
      %s25 = sphi 0, %s27
      %s28 = sphi 0, %s25
      %s29 = sphi 0, %s28
      %s45 = sphi 0, %s29
      %s51 = sphi 0, %s53
      %s54 = sphi 0, %s51
      %s55 = sphi 0, %s54
      %s71 = sphi 0, %s55
      %s75 = sphi 0, %s75
      %s77 = sphi 0, %s75
      %s78 = sphi 0, %s77
      %s92 = sphi 0, %s78
    $region4: #{tpu_custom_call.1} parent=1 // loop_header_branch
      %18 = sbr.rel (%p16) target = $region8
    $region5: #{tpu_custom_call.1} parent=1 // loop_body
      %s20 = ssub.s32 %s15, 1
      %s21 = ssub.s32 %s15, 2
      %s22 = sadd.s32 %s15, 1
      %s23 = ssub.s32 %s15, %s22
      %p24 = scmp.eq.s32.totalorder %s23, 0
      %s26 = sadd.s32 %s25, 1
      %s27 = scalar_select %p24, %s25, %s26
      %p30 = pneg %p24
      %p31 = scmp.eq.s32.totalorder %s15, 1
      %p32 = por %p30, %p31
      %p33 = scmp.ne.s32.totalorder %s25, %s28
      %p34 = scmp.eq.s32.totalorder %s15, 0
      %p35 = por %p33, %p34
      %p36 = scmp.ne.s32.totalorder %s25, %s28
      %p37 = scmp.eq.s32.totalorder %s20, 1
      %p38 = por %p36, %p37
      %p39 = scmp.ne.s32.totalorder %s28, %s29
      %p40 = scmp.eq.s32.totalorder %s20, 0
      %p41 = por %p39, %p40
      %p42 = scmp.ne.s32.totalorder %s28, %s29
      %p43 = scmp.eq.s32.totalorder %s21, 1
      %p44 = por %p42, %p43
      %p46 = scmp.ne.s32.totalorder %s29, %s45
      %p47 = scmp.eq.s32.totalorder %s21, 0
      %p48 = por %p46, %p47
      %s49 = ssub.s32 %s15, %s22
      %p50 = scmp.eq.s32.totalorder %s49, 0
      %s52 = sadd.s32 %s51, 1
      %s53 = scalar_select %p50, %s51, %s52
      %p56 = pneg %p50
      %p57 = scmp.eq.s32.totalorder %s15, 1
      %p58 = por %p56, %p57
      %p59 = scmp.ne.s32.totalorder %s51, %s54
      %p60 = scmp.eq.s32.totalorder %s15, 0
      %p61 = por %p59, %p60
      %p62 = scmp.ne.s32.totalorder %s51, %s54
      %p63 = scmp.eq.s32.totalorder %s20, 1
      %p64 = por %p62, %p63
      %p65 = scmp.ne.s32.totalorder %s54, %s55
      %p66 = scmp.eq.s32.totalorder %s20, 0
      %p67 = por %p65, %p66
      %p68 = scmp.ne.s32.totalorder %s54, %s55
      %p69 = scmp.eq.s32.totalorder %s21, 1
      %p70 = por %p68, %p69
      %p72 = scmp.ne.s32.totalorder %s55, %s71
      %p73 = scmp.eq.s32.totalorder %s21, 0
      %p74 = por %p72, %p73
      %s76 = sadd.s32 %s75, 1
      %p79 = scmp.eq.s32.totalorder %s15, 1
      %p80 = scmp.ne.s32.totalorder %s75, %s77
      %p81 = scmp.eq.s32.totalorder %s15, 0
      %p82 = por %p80, %p81
      %p83 = scmp.ne.s32.totalorder %s75, %s77
      %p84 = scmp.eq.s32.totalorder %s20, 1
      %p85 = por %p83, %p84
      %p86 = scmp.ne.s32.totalorder %s77, %s78
      %p87 = scmp.eq.s32.totalorder %s20, 0
      %p88 = por %p86, %p87
      %p89 = scmp.ne.s32.totalorder %s77, %s78
      %p90 = scmp.eq.s32.totalorder %s21, 1
      %p91 = por %p89, %p90
      %p93 = scmp.ne.s32.totalorder %s78, %s92
      %p94 = scmp.eq.s32.totalorder %s21, 0
      %p95 = por %p93, %p94
      %p96 = scmp.le.s32.totalorder 1, %s15
      %p97 = scmp.lt.s32.totalorder %s15, 3
      %p98 = pnand %p96, %p97
      %p99 = pneg %p98
      // Predicated region
      $region9: #{tpu_custom_call.1} parent=5 // pred_check
        _
      $region10: #{tpu_custom_call.1} parent=5 // pred_check_branch
        %101 = sbr.rel (%p98) target = $region12
      $region11: #{tpu_custom_call.1} parent=5 // pred_region
        %s102 = ssub.s32 %s15, 1
      $region12: #{tpu_custom_call.1} parent=5 // pred_fallthru
        _
      %p103 = scmp.lt.s32.totalorder %s15, 2
      // Predicated region
      $region13: #{tpu_custom_call.1} parent=5 // pred_check
        %p104 = pneg %p103
      $region14: #{tpu_custom_call.1} parent=5 // pred_check_branch
        %106 = sbr.rel (%p104) target = $region16
      $region15: #{tpu_custom_call.1} parent=5 // pred_region
        // Predicated region
        $region17: #{tpu_custom_call.1} parent=15 // pred_check
          %p107 = pneg %p35
        $region18: #{tpu_custom_call.1} parent=15 // pred_check_branch
          %109 = sbr.rel (%p107) target = $region20
        $region19: #{tpu_custom_call.1} parent=15 // pred_region
          %s110 = sand.u32 %s25, 1
          %s111 = scalar_lea.sflag [#allocation5], %s110
          %s112 = sand.u32 %s25, 1
          %s113 = smul.addr %s112, 32
          %s114 = scalar_lea.vmem [#allocation4], %s113
          %s115 = smul.u32 4, %s15
          %117 = vsyncadd %s111, 0
          %s118 = smul.addr %s115, 8
          %s119 = scalar_lea.hbm %s0, %s118
          %s121 = sshll.u32 %s119, 4
          %s122 = int_to_ptr.hbm [resolvable:$true] %s121
          %s123 = sshll.u32 %s114, 4
          %s124 = int_to_ptr.vmem [resolvable:$true] %s123
          %126 = dma.hbm_to_vmem [thread:$0]  %s122, 512, %s124, %s111
        $region20: #{tpu_custom_call.1} parent=15 // pred_fallthru
          _
        // Predicated region
        $region21: #{tpu_custom_call.1} parent=15 // pred_check
          %p127 = pneg %p61
        $region22: #{tpu_custom_call.1} parent=15 // pred_check_branch
          %129 = sbr.rel (%p127) target = $region24
        $region23: #{tpu_custom_call.1} parent=15 // pred_region
          %s130 = sand.u32 %s51, 1
          %s131 = scalar_lea.sflag [#allocation8], %s130
          %s132 = sand.u32 %s51, 1
          %s133 = smul.addr %s132, 32
          %s134 = scalar_lea.vmem [#allocation7], %s133
          %s135 = smul.u32 4, %s15
          %137 = vsyncadd %s131, 0
          %s138 = smul.addr %s135, 8
          %s139 = scalar_lea.hbm %s1, %s138
          %s141 = sshll.u32 %s139, 4
          %s142 = int_to_ptr.hbm [resolvable:$true] %s141
          %s143 = sshll.u32 %s134, 4
          %s144 = int_to_ptr.vmem [resolvable:$true] %s143
          %146 = dma.hbm_to_vmem [thread:$0]  %s142, 512, %s144, %s131
        $region24: #{tpu_custom_call.1} parent=15 // pred_fallthru
          _
      $region16: #{tpu_custom_call.1} parent=5 // pred_fallthru
        _
      %p147 = scmp.le.s32.totalorder 1, %s15
      %p148 = scmp.lt.s32.totalorder %s15, 3
      %p149 = pnand %p147, %p148
      %p150 = pneg %p149
      // Predicated region
      $region25: #{tpu_custom_call.1} parent=5 // pred_check
        _
      $region26: #{tpu_custom_call.1} parent=5 // pred_check_branch
        %152 = sbr.rel (%p149) target = $region28
      $region27: #{tpu_custom_call.1} parent=5 // pred_region
        %s153 = ssub.s32 %s15, 1
        %s154 = sand.u32 %s28, 1
        %s155 = scalar_lea.sflag [#allocation5], %s154
        %s156 = sand.u32 %s28, 1
        %s157 = smul.addr %s156, 32
        %s158 = scalar_lea.vmem [#allocation4], %s157
        // Predicated region
        $region29: #{tpu_custom_call.1} parent=27 // pred_check
          %p159 = pneg %p41
        $region30: #{tpu_custom_call.1} parent=27 // pred_check_branch
          %161 = sbr.rel (%p159) target = $region32
        $region31: #{tpu_custom_call.1} parent=27 // pred_region
          %163 = dma.done %s155, 512
        $region32: #{tpu_custom_call.1} parent=27 // pred_fallthru
          _
        %s164 = sand.u32 %s54, 1
        %s165 = scalar_lea.sflag [#allocation8], %s164
        %s166 = sand.u32 %s54, 1
        %s167 = smul.addr %s166, 32
        %s168 = scalar_lea.vmem [#allocation7], %s167
        // Predicated region
        $region33: #{tpu_custom_call.1} parent=27 // pred_check
          %p169 = pneg %p67
        $region34: #{tpu_custom_call.1} parent=27 // pred_check_branch
          %171 = sbr.rel (%p169) target = $region36
        $region35: #{tpu_custom_call.1} parent=27 // pred_region
          %173 = dma.done %s165, 512
        $region36: #{tpu_custom_call.1} parent=27 // pred_fallthru
          _
        %s174 = sand.u32 %s28, 1
        %s175 = scalar_lea.sflag [#allocation5], %s174
        %s176 = sand.u32 %s28, 1
        %s177 = smul.addr %s176, 32
        %s178 = scalar_lea.vmem [#allocation4], %s177
        %p179 = pneg %p41
        %p180 = pneg %p38
        %s181 = sand.u32 %s54, 1
        %s182 = scalar_lea.sflag [#allocation8], %s181
        %s183 = sand.u32 %s54, 1
        %s184 = smul.addr %s183, 32
        %s185 = scalar_lea.vmem [#allocation7], %s184
        %p186 = pneg %p67
        %p187 = pneg %p64
        %p188 = pneg %p88
        %p189 = pneg %p85
        %s190 = smul.u32 4, %s20
        %s191 = smul.u32 4, %s20
        %p192 = scmp.eq.s32.totalorder %s20, 0
        // Predicated region
        $region37: #{tpu_custom_call.1} parent=27 // pred_check
          %p193 = pneg %p192
        $region38: #{tpu_custom_call.1} parent=27 // pred_check_branch
          %195 = sbr.rel (%p193) target = $region40
        $region39: #{tpu_custom_call.1} parent=27 // pred_region
          %196 = vst [vmem:[#allocation2] sm:$0xff] 0.0
          %197 = vst [vmem:[#allocation2 + $0x8] sm:$0xff] 0.0
          %198 = vst [vmem:[#allocation2 + $0x10] sm:$0xff] 0.0
          %199 = vst [vmem:[#allocation2 + $0x18] sm:$0xff] 0.0
          %200 = vst [vmem:[#allocation3] sm:$0xff] 0.0
          %201 = vst [vmem:[#allocation3 + $0x8] sm:$0xff] 0.0
          %202 = vst [vmem:[#allocation3 + $0x10] sm:$0xff] 0.0
          %203 = vst [vmem:[#allocation3 + $0x18] sm:$0xff] 0.0
        $region40: #{tpu_custom_call.1} parent=27 // pred_fallthru
          _
        %v204 = vld [vmem:[%s158] sm:$0xff]
        %v205 = vld [vmem:[%s158 + $0x8] sm:$0xff]
        %v206 = vld [vmem:[%s158 + $0x10] sm:$0xff]
        %v207 = vld [vmem:[%s158 + $0x18] sm:$0xff]
        %v208 = vmax.f32 %v204, 0.0001
        %v209 = vmax.f32 %v205, 0.0001
        %v210 = vmax.f32 %v206, 0.0001
        %v211 = vmax.f32 %v207, 0.0001
        %v212 = vmin.f32 %v208, 0.9999
        %v213 = vmin.f32 %v209, 0.9999
        %v214 = vmin.f32 %v210, 0.9999
        %v215 = vmin.f32 %v211, 0.9999
        %v216 = vld [vmem:[%s168] sm:$0xff]
        %v217 = vld [vmem:[%s168 + $0x8] sm:$0xff]
        %v218 = vld [vmem:[%s168 + $0x10] sm:$0xff]
        %v219 = vld [vmem:[%s168 + $0x18] sm:$0xff]
        %vm220 = vcmp.eq.f32.partialorder %v216, 1.0
        %vm221 = vcmp.eq.f32.partialorder %v217, 1.0
        %vm222 = vcmp.eq.f32.partialorder %v218, 1.0
        %vm223 = vcmp.eq.f32.partialorder %v219, 1.0
        %vm224 = vcmp.lt.f32.partialorder %v216, 1.0
        %vm225 = vcmp.lt.f32.partialorder %v217, 1.0
        %vm226 = vcmp.lt.f32.partialorder %v218, 1.0
        %vm227 = vcmp.lt.f32.partialorder %v219, 1.0
        %v228 = vsub.f32 1.0, %v212
        %v229 = vsub.f32 1.0, %v213
        %v230 = vsub.f32 1.0, %v214
        %v231 = vsub.f32 1.0, %v215
        %v232 = vsub.f32 1.0, %v216
        %v233 = vsub.f32 1.0, %v217
        %v234 = vsub.f32 1.0, %v218
        %v235 = vsub.f32 1.0, %v219
        %v236 = vsel %vm220, %v212, %v228
        %v237 = vsel %vm221, %v213, %v229
        %v238 = vsel %vm222, %v214, %v230
        %v239 = vsel %vm223, %v215, %v231
        %v240 = vlog2.pop %v236
        %v241 = vmul.f32 %v240, 0.6931472
        %v242 = vlog2.pop %v237
        %v243 = vmul.f32 %v242, 0.6931472
        %v244 = vlog2.pop %v238
        %v245 = vmul.f32 %v244, 0.6931472
        %v246 = vlog2.pop %v239
        %v247 = vmul.f32 %v246, 0.6931472
        %v248 = vmul.f32 %v232, %v232
        %v249 = vmul.f32 %v233, %v233
        %v250 = vmul.f32 %v234, %v234
        %v251 = vmul.f32 %v235, %v235
        %v252 = vmul.f32 %v248, %v248
        %v253 = vmul.f32 %v249, %v249
        %v254 = vmul.f32 %v250, %v250
        %v255 = vmul.f32 %v251, %v251
        %v256 = vmul.f32 %v212, %v212
        %v257 = vmul.f32 %v213, %v213
        %v258 = vmul.f32 %v214, %v214
        %v259 = vmul.f32 %v215, %v215
        %v260 = vmul.f32 %v252, %v256
        %v261 = vmul.f32 %v253, %v257
        %v262 = vmul.f32 %v254, %v258
        %v263 = vmul.f32 %v255, %v259
        %v264 = vmul.f32 %v228, %v228
        %v265 = vmul.f32 %v229, %v229
        %v266 = vmul.f32 %v230, %v230
        %v267 = vmul.f32 %v231, %v231
        %v268 = vsel %vm224, %v260, 0.0
        %v269 = vsel %vm225, %v261, 0.0
        %v270 = vsel %vm226, %v262, 0.0
        %v271 = vsel %vm227, %v263, 0.0
        %v272 = vsel %vm220, %v264, %v268
        %v273 = vsel %vm221, %v265, %v269
        %v274 = vsel %vm222, %v266, %v270
        %v275 = vsel %vm223, %v267, %v271
        %v276 = vld [vmem:[#allocation2] sm:$0xff]
        %v277 = vld [vmem:[#allocation2 + $0x8] sm:$0xff]
        %v278 = vld [vmem:[#allocation2 + $0x10] sm:$0xff]
        %v279 = vld [vmem:[#allocation2 + $0x18] sm:$0xff]
        %v280 = vmul.f32 %v272, %v241
        %v281 = vmul.f32 %v273, %v243
        %v282 = vmul.f32 %v274, %v245
        %v283 = vmul.f32 %v275, %v247
        %v284 = vadd.f32 %v276, %v280
        %v285 = vadd.f32 %v277, %v281
        %v286 = vadd.f32 %v278, %v282
        %v287 = vadd.f32 %v279, %v283
        %288 = vst [vmem:[#allocation2] sm:$0xff] %v284
        %289 = vst [vmem:[#allocation2 + $0x8] sm:$0xff] %v285
        %290 = vst [vmem:[#allocation2 + $0x10] sm:$0xff] %v286
        %291 = vst [vmem:[#allocation2 + $0x18] sm:$0xff] %v287
        %v292 = vld [vmem:[#allocation3] sm:$0xff]
        %v293 = vld [vmem:[#allocation3 + $0x8] sm:$0xff]
        %v294 = vld [vmem:[#allocation3 + $0x10] sm:$0xff]
        %v295 = vld [vmem:[#allocation3 + $0x18] sm:$0xff]
        %v296 = vsel %vm220, 1, 0
        %v297 = vsel %vm221, 1, 0
        %v298 = vsel %vm222, 1, 0
        %v299 = vsel %vm223, 1, 0
        %v300 = vcvt.s32.f32 %v296
        %v301 = vcvt.s32.f32 %v297
        %v302 = vcvt.s32.f32 %v298
        %v303 = vcvt.s32.f32 %v299
        %v304 = vadd.f32 %v292, %v300
        %v305 = vadd.f32 %v293, %v301
        %v306 = vadd.f32 %v294, %v302
        %v307 = vadd.f32 %v295, %v303
        %308 = vst [vmem:[#allocation3] sm:$0xff] %v304
        %309 = vst [vmem:[#allocation3 + $0x8] sm:$0xff] %v305
        %310 = vst [vmem:[#allocation3 + $0x10] sm:$0xff] %v306
        %311 = vst [vmem:[#allocation3 + $0x18] sm:$0xff] %v307
        %p312 = scmp.eq.s32.totalorder %s20, 1
        // Predicated region
        $region41: #{tpu_custom_call.1} parent=27 // pred_check
          %p313 = pneg %p312
        $region42: #{tpu_custom_call.1} parent=27 // pred_check_branch
          %315 = sbr.rel (%p313) target = $region44
        $region43: #{tpu_custom_call.1} parent=27 // pred_region
          %v316 = vld [vmem:[#allocation2] sm:$0xff]
          %v317 = vld [vmem:[#allocation2 + $0x8] sm:$0xff]
          %v318 = vld [vmem:[#allocation2 + $0x10] sm:$0xff]
          %v319 = vld [vmem:[#allocation2 + $0x18] sm:$0xff]
          %v320 = vadd.f32 %v316, %v317
          %v321 = vadd.f32 %v320, %v318
          %v322 = vadd.f32 %v321, %v319
          %323 = vadd.xlane.f32.xlu0 %v322
          %v324 = vpop.xlane.xlu0 %323
          %v325 = vld [vmem:[#allocation3] sm:$0xff]
          %v326 = vld [vmem:[#allocation3 + $0x8] sm:$0xff]
          %v327 = vld [vmem:[#allocation3 + $0x10] sm:$0xff]
          %v328 = vld [vmem:[#allocation3 + $0x18] sm:$0xff]
          %v329 = vadd.f32 %v325, %v326
          %v330 = vadd.f32 %v329, %v327
          %v331 = vadd.f32 %v330, %v328
          %332 = vadd.xlane.f32.xlu0 %v331
          %v333 = vpop.xlane.xlu0 %332
          %vm334 = vcmp.gt.f32.partialorder %v333, 0.0
          %v335 = vsub.f32 0.0, %v324
          %v336 = vmax.f32 %v333, 1.0
          %v337 = vrcp.pop %v336
          %v338 = vmul.f32 %v336, %v337
          %v339 = vsub.f32 1.0, %v338
          %v340 = vmul.f32 %v337, %v339
          %v341 = vadd.f32 %v337, %v340
          %vm342 = vweird.f32 %v336
          %vm343 = vweird.f32 %v337
          %vm344 = vmor %vm342, %vm343
          %v345 = vsel %vm344, %v337, %v341
          %v346 = vand.u32 2147483647, %v336
          %vm347 = vcmp.eq.f32.partialorder %v346, 8.507059e+37
          %v348 = vand.u32 %v336, 2147483648
          %v349 = vor.u32 1.1754944e-38, %v348
          %v350 = vsel %vm347, %v349, %v345
          %v351 = vmul.f32 %v335, %v350
          %v352 = vsel %vm334, %v351, %v335
          %vm353 = vcmask 7168
          %v354 = vsel %vm353, %v352, 0.0
          %355 = vadd.xlane.f32.xlu0 %v354
          %v356 = vpop.xlane.xlu0 %355
          %v357 = vrot.slane %v356, 4
          %v358 = vadd.f32 %v356, %v357
          %v359 = vrot.slane %v358, 2
          %v360 = vadd.f32 %v358, %v359
          %v361 = vrot.slane %v360, 1
          %v362 = vadd.f32 %v360, %v361
          %s363 = vtos %v362
          %s364 = scalar_lea.smem [#allocation9], 0
          %365 = sst [smem:[%s364]] %s363
        $region44: #{tpu_custom_call.1} parent=27 // pred_fallthru
          _
        // Predicated region
        $region45: #{tpu_custom_call.1} parent=27 // pred_check
          %p366 = pneg %p85
        $region46: #{tpu_custom_call.1} parent=27 // pred_check_branch
          %368 = sbr.rel (%p366) target = $region48
        $region47: #{tpu_custom_call.1} parent=27 // pred_region
          %370 = vsyncadd [#allocation6], 0
          %s372 = sshll.u32 %s2, 4
          %s373 = int_to_ptr.hbm [resolvable:$true] %s372
          %375 = dma.smem_to_hbm [#allocation9], 16, %s373, [#allocation6]
        $region48: #{tpu_custom_call.1} parent=27 // pred_fallthru
          _
        // Predicated region
        $region49: #{tpu_custom_call.1} parent=27 // pred_check
          %p376 = pneg %p85
        $region50: #{tpu_custom_call.1} parent=27 // pred_check_branch
          %378 = sbr.rel (%p376) target = $region52
        $region51: #{tpu_custom_call.1} parent=27 // pred_region
          %380 = dma.done [#allocation6], 16
        $region52: #{tpu_custom_call.1} parent=27 // pred_fallthru
          _
        %381 = sfence
      $region28: #{tpu_custom_call.1} parent=5 // pred_fallthru
        _
      %p382 = scmp.le.s32.totalorder 2, %s15
      // Predicated region
      $region53: #{tpu_custom_call.1} parent=5 // pred_check
        %p383 = pneg %p382
      $region54: #{tpu_custom_call.1} parent=5 // pred_check_branch
        %385 = sbr.rel (%p383) target = $region56
      $region55: #{tpu_custom_call.1} parent=5 // pred_region
        %s386 = ssub.s32 %s15, 2
      $region56: #{tpu_custom_call.1} parent=5 // pred_fallthru
        _
    $region6: #{tpu_custom_call.1} parent=1 // loop_footer
      %s19 = sadd.s32 1, %s15
    $region7: #{tpu_custom_call.1} parent=1 // loop_footer_branch
      %14 = sbr.rel target = $region3
    $region8: #{tpu_custom_call.1} parent=1 // loop_exit
      _
    %387 = vsyncpa [#allocation5], 1
    %s388 = scalar_lea.sflag [#allocation5], 1
    %389 = vsyncpa %s388, 1
    %390 = vsyncpa [#allocation8], 1
    %s391 = scalar_lea.sflag [#allocation8], 1
    %392 = vsyncpa %s391, 1
    %393 = vsyncpa [#allocation6], 1
    %s394 = scalar_lea.sflag [#allocation6], 1
    %395 = vsyncpa %s394, 1

</llo_original>
